<compile_context>
chip_gen: v7x
topology: tpu7x:2x2x1
jax: 0.10.0
libtpu: 0.0.40
codegen_flags: <defaults>
</compile_context>

<pallas_src>
import jax
import jax.numpy as jnp
from jax.experimental import pallas as pl
from jax.experimental.pallas import tpu as pltpu


def _ddpm_forward_kernel(sab_ref, somb_ref, x0_ref, eta_ref, out_ref):
    # sab_ref / somb_ref: (B_TILE, 1) f32 per-sample scale columns.
    # x0_ref / eta_ref / out_ref: (B_TILE, C_TILE) lane-dense tiles.
    sab = sab_ref[...]                       # broadcasts over the lane axis (VPU)
    somb = somb_ref[...]
    noisy = (sab * x0_ref[...].astype(jnp.float32)
             + somb * eta_ref[...].astype(jnp.float32))
    out_ref[...] = noisy.astype(out_ref.dtype)


def _choose_tiles(n, chw, itemsize, target_block_bytes=4 << 20):
    """Pick (B_TILE, C_TILE) so one data block is ~target_block_bytes."""
    lane = 128
    # Dtype-aware sublane alignment: 8 rows f32, 16 bf16, 32 int8/fp8.
    sublane_align = max(8, 32 // itemsize)

    # Lane (feature) tile: whole flattened CHW if a sublane_align-row block of
    # it fits the budget; otherwise a 128-multiple chunk sized assuming the
    # block is at least sublane_align rows tall (prevents the 8x blowup the
    # old heuristic had for large chw).
    max_c_full = max(lane, target_block_bytes // (sublane_align * itemsize))
    if chw <= max_c_full:
        c_tile = chw                          # == full dim -> no 128 constraint
    else:
        c_tile = max(lane, (max_c_full // lane) * lane)

    # Batch (sublane) tile from the combined per-buffer footprint:
    #   3 data arrays * c_tile * itemsize + 2 scale cols lane-padded to 128 f32.
    per_row_bytes = 3 * c_tile * itemsize + 2 * lane * 4
    b_tile = max(1, (3 * target_block_bytes) // per_row_bytes)
    if b_tile >= n:
        b_tile = n                            # == full dim -> no sublane constraint
    else:
        b_tile = max(sublane_align, (b_tile // sublane_align) * sublane_align)

    # Megacore (v7x): guarantee >= 2 blocks along a "parallel" axis when the
    # whole problem would otherwise collapse to a (1, 1) grid, so both
    # TensorCores get work and double-buffering is meaningful.
    if b_tile >= n and c_tile >= chw:
        if chw >= 2 * lane:
            c_tile = max(lane, ((chw // 2) // lane) * lane)
        elif n >= 2 * sublane_align:
            b_tile = max(sublane_align, ((n // 2) // sublane_align) * sublane_align)

    return int(b_tile), int(c_tile)


def ddpm_forward(x0, eta, alpha_bars, t):
    """Pallas implementation of MyDDPM.forward.

    x0, eta: float32 arrays of shape (n, c, h, w)   (NCHW)
    alpha_bars: float32 array of shape (n_steps,)
    t: int32 array of shape (n,)
    """
    n, c, h, w = x0.shape
    chw = c * h * w
    itemsize = jnp.dtype(x0.dtype).itemsize

    # --- plain-JAX glue: gather schedule values, sqrt in f32 ---
    a_bar = alpha_bars[t].astype(jnp.float32)              # (n,)
    sqrt_ab = jnp.sqrt(a_bar).reshape(n, 1)                 # (n, 1)
    sqrt_omb = jnp.sqrt(1.0 - a_bar).reshape(n, 1)          # (n, 1)

    # --- lane-dense 2D views (no padding; Pallas masks ragged last blocks) ---
    x0_2d = x0.reshape(n, chw)
    eta_2d = eta.reshape(n, chw)

    b_tile, c_tile = _choose_tiles(n, chw, itemsize)
    grid = (pl.cdiv(n, b_tile), pl.cdiv(chw, c_tile))

    grid_spec = pl.GridSpec(
        grid=grid,
        in_specs=[
            pl.BlockSpec((b_tile, 1), lambda i, j: (i, 0)),        # sqrt(a_bar)
            pl.BlockSpec((b_tile, 1), lambda i, j: (i, 0)),        # sqrt(1-a_bar)
            pl.BlockSpec((b_tile, c_tile), lambda i, j: (i, j)),   # x0
            pl.BlockSpec((b_tile, c_tile), lambda i, j: (i, j)),   # eta
        ],
        out_specs=pl.BlockSpec((b_tile, c_tile), lambda i, j: (i, j)),
    )

    cost = pl.CostEstimate(
        flops=3 * n * chw,                                   # 2 mul + 1 add / elem
        transcendentals=0,
        bytes_accessed=3 * n * chw * itemsize + 2 * n * 4,   # x0 + eta + out + scales
    )

    out_2d = pl.pallas_call(
        _ddpm_forward_kernel,
        out_shape=jax.ShapeDtypeStruct((n, chw), x0.dtype),
        grid_spec=grid_spec,
        compiler_params=pltpu.CompilerParams(
            dimension_semantics=("parallel", "parallel"),
            vmem_limit_bytes=48 << 20,   # ~26 MiB double-buffered footprint + headroom
        ),
        cost_estimate=cost,
    )(sqrt_ab, sqrt_omb, x0_2d, eta_2d)

    return out_2d.reshape(n, c, h, w)


def make_ddpm_schedule(n_steps=200, min_beta=1e-4, max_beta=0.02):
    """Deterministic schedule, matching MyDDPM.__init__."""
    betas = jnp.linspace(min_beta, max_beta, n_steps, dtype=jnp.float32)
    alphas = 1.0 - betas
    alpha_bars = jnp.cumprod(alphas)            # prod(alphas[:i+1]) for each i
    return betas, alphas, alpha_bars


# TODO(synk): MyDDPM.backward just delegates to an arbitrary `network(x, t)`
# (a U-Net passed in at construction); it is not part of this module's own
# compute and is not implemented here.
# TODO(synk): optionally fuse eta generation into the kernel via
# pltpu.prng_seed + pltpu.stateful_normal (drops ~25% HBM traffic) — only
# valid for callers that do not supply a specific eta.


if __name__ == "__main__":
    n_steps = 200
    n, c, h, w = 2, 4, 16, 16                   # small NCHW example

    _, _, alpha_bars = make_ddpm_schedule(n_steps)

    key = jax.random.PRNGKey(0)
    k_x, k_eta, k_t = jax.random.split(key, 3)
    x0 = jax.random.normal(k_x, (n, c, h, w), dtype=jnp.float32)
    eta = jax.random.normal(k_eta, (n, c, h, w), dtype=jnp.float32)
    t = jax.random.randint(k_t, (n,), 0, n_steps, dtype=jnp.int32)

    noisy = ddpm_forward(x0, eta, alpha_bars, t)
    jax.block_until_ready(noisy)

    # reference check in plain JAX
    a_bar = alpha_bars[t]
    ref = (jnp.sqrt(a_bar).reshape(n, 1, 1, 1) * x0
           + jnp.sqrt(1.0 - a_bar).reshape(n, 1, 1, 1) * eta)
    assert jnp.allclose(noisy, ref, atol=1e-5, rtol=1e-5)

    print("KERNEL_OK")
</pallas_src>

<mosaic_0001>
module attributes {stable_mosaic.version = 11 : i64} {
  func.func @_ddpm_forward_kernel(%arg0: i32, %arg1: i32, %arg2: memref<2x1xf32, #tpu.memory_space<vmem>>, %arg3: memref<2x1xf32, #tpu.memory_space<vmem>>, %arg4: memref<2x512xf32, #tpu.memory_space<vmem>>, %arg5: memref<2x512xf32, #tpu.memory_space<vmem>>, %arg6: memref<2x512xf32, #tpu.memory_space<vmem>>) attributes {dimension_semantics = [#tpu.dimension_semantics<parallel>, #tpu.dimension_semantics<parallel>], iteration_bounds = array<i64: 1, 2>, scalar_prefetch = 0 : i64, scratch_operands = 0 : i64, tpu.core_type = #tpu.core_type<tc>, window_params = [{transform_indices = @transform_0, window_bounds = array<i64: 2, 1>}, {transform_indices = @transform_1, window_bounds = array<i64: 2, 1>}, {transform_indices = @transform_2, window_bounds = array<i64: 2, 512>}, {transform_indices = @transform_3, window_bounds = array<i64: 2, 512>}, {transform_indices = @transform_4, window_bounds = array<i64: 2, 512>}]} {
    %c0 = arith.constant 0 : index
    %c0_0 = arith.constant 0 : index
    %0 = vector.load %arg2[%c0, %c0_0] : memref<2x1xf32, #tpu.memory_space<vmem>>, vector<2x1xf32>
    %c0_1 = arith.constant 0 : index
    %c0_2 = arith.constant 0 : index
    %1 = vector.load %arg3[%c0_1, %c0_2] : memref<2x1xf32, #tpu.memory_space<vmem>>, vector<2x1xf32>
    %c0_3 = arith.constant 0 : index
    %c0_4 = arith.constant 0 : index
    %2 = vector.load %arg4[%c0_3, %c0_4] : memref<2x512xf32, #tpu.memory_space<vmem>>, vector<2x512xf32>
    %3 = vector.broadcast %0 : vector<2x1xf32> to vector<2x512xf32>
    %4 = arith.mulf %3, %2 : vector<2x512xf32>
    %c0_5 = arith.constant 0 : index
    %c0_6 = arith.constant 0 : index
    %5 = vector.load %arg5[%c0_5, %c0_6] : memref<2x512xf32, #tpu.memory_space<vmem>>, vector<2x512xf32>
    %6 = vector.broadcast %1 : vector<2x1xf32> to vector<2x512xf32>
    %7 = arith.mulf %6, %5 : vector<2x512xf32>
    %8 = arith.addf %4, %7 : vector<2x512xf32>
    %c0_7 = arith.constant 0 : index
    %c0_8 = arith.constant 0 : index
    %9 = vector.load %arg6[%c0_7, %c0_8] : memref<2x512xf32, #tpu.memory_space<vmem>>, vector<2x512xf32>
    tpu.vector_store %arg6[%c0_7, %c0_8], %8 {strides = array<i32>} : memref<2x512xf32, #tpu.memory_space<vmem>>, vector<2x512xf32>,
    return
  }
  func.func @transform_0(%arg0: i32, %arg1: i32) -> (i32, i32) {
    %c0_i32 = arith.constant 0 : i32
    %c0_i32_0 = arith.constant 0 : i32
    return %arg0, %c0_i32 : i32, i32
  }
  func.func @transform_1(%arg0: i32, %arg1: i32) -> (i32, i32) {
    %c0_i32 = arith.constant 0 : i32
    %c0_i32_0 = arith.constant 0 : i32
    return %arg0, %c0_i32 : i32, i32
  }
  func.func @transform_2(%arg0: i32, %arg1: i32) -> (i32, i32) {
    %c0_i32 = arith.constant 0 : i32
    return %arg0, %arg1 : i32, i32
  }
  func.func @transform_3(%arg0: i32, %arg1: i32) -> (i32, i32) {
    %c0_i32 = arith.constant 0 : i32
    return %arg0, %arg1 : i32, i32
  }
  func.func @transform_4(%arg0: i32, %arg1: i32) -> (i32, i32) {
    %c0_i32 = arith.constant 0 : i32
    return %arg0, %arg1 : i32, i32
  }
}

</mosaic_0001>

<llo_original>
// kernel: tpu_custom_call.1
$region0: #{tpu_custom_call.1}
  #allocation0 [shape = 'u32[]', space=smem, size = 0x4, offset = 0x4, fixed_abs, tag = 'smem constant byte address 0x4 - core index']
  #allocation1 [shape = 'u32[144,128]{1,0:T(1,128)}', space=vmem, size = 0x12000, scoped, tag = 'internal scratch']
  %s0 = inlined_call_operand.vmem [shape: f32[2,1], index: 0, kind: input, shape index: {}]
  %s1 = inlined_call_operand.vmem [shape: f32[2,1], index: 1, kind: input, shape index: {}]
  %s2 = inlined_call_operand.hbm [shape: f32[2,1024], index: 2, kind: input, shape index: {}]
  %s3 = inlined_call_operand.vmem [shape: f32[2,1024], index: 3, kind: input, shape index: {}]
  %s4 = inlined_call_operand.hbm [shape: f32[2,1024], index: 4, kind: output, shape index: {}]
  %s5 = sld [smem:[#allocation0]]
  $region53: #{tpu_custom_call.1} parent=0
    _
  %s7 = ssub.s32 1, %s5
  %s8 = scalar_select 0, %s7, %s5
  $region1: #{tpu_custom_call.1} parent=0
    #allocation2 [shape = 'u8[8192]{0}', space=vmem, size = 0x2000, scoped, tag = 'input window, operand 2']
    #allocation3 [shape = 's32[2]{0}', space=sflag, size = 0x8, scoped, tag = 'scoped memory for tpu_custom_call.1']
    #allocation4 [shape = 's32[2]{0}', space=sflag, size = 0x8, scoped, tag = 'scoped memory for tpu_custom_call.1']
    #allocation5 [shape = 'u8[8192]{0}', space=vmem, size = 0x2000, scoped, tag = 'output window, operand 0']
    %9 = vsyncpa [#allocation3], 0
    %s10 = scalar_lea.sflag [#allocation3], 1
    %11 = vsyncpa %s10, 0
    %12 = vsyncpa [#allocation4], 0
    %s13 = scalar_lea.sflag [#allocation4], 1
    %14 = vsyncpa %s13, 0
    loop: start=0, step=1, limit=4
    $region2: #{tpu_custom_call.1} parent=1 // loop_pre_header
      _
    $region3: #{tpu_custom_call.1} parent=1 // loop_header
      %s16 = sphi 0, %s20
      %p17 = scmp.ge.s32.totalorder %s16, 4
      %s23 = sphi 0, %s35
      %s24 = sphi 0, %s31
      %s25 = sphi 0, %s23
      %s26 = sphi 0, %s24
      %s27 = sphi 0, %s25
      %s28 = sphi 0, %s26
      %s38 = sphi 0, %s40
      %s41 = sphi 0, %s38
      %s42 = sphi 0, %s41
      %s58 = sphi 0, %s42
      %s64 = sphi 0, %s66
      %s67 = sphi 0, %s64
      %s68 = sphi 0, %s67
      %s84 = sphi 0, %s68
      %s92 = sphi 0, %s94
      %s95 = sphi 0, %s92
      %s96 = sphi 0, %s95
      %s112 = sphi 0, %s96
      %s120 = sphi 0, %s122
      %s123 = sphi 0, %s120
      %s124 = sphi 0, %s123
      %s140 = sphi 0, %s124
      %s148 = sphi 0, %s150
      %s151 = sphi 0, %s148
      %s152 = sphi 0, %s151
      %s168 = sphi 0, %s152
    $region4: #{tpu_custom_call.1} parent=1 // loop_header_branch
      %19 = sbr.rel (%p17) target = $region8
    $region5: #{tpu_custom_call.1} parent=1 // loop_body
      %s21 = ssub.s32 %s16, 1
      %s22 = ssub.s32 %s16, 2
      %s29 = sadd.s32 1, %s24
      %p30 = scmp.ge.s32.totalorder %s29, 2
      %s31 = scalar_select %p30, 0, %s29
      %s32 = sadd.s32 1, %s23
      %s33 = scalar_select %p30, %s32, %s23
      %p34 = scmp.ge.s32.totalorder %s33, 1
      %s35 = scalar_select %p34, 0, %s33
      %s36 = ssub.s32 %s23, %s35
      %p37 = scmp.eq.s32.totalorder %s36, 0
      %s39 = sadd.s32 %s38, 1
      %s40 = scalar_select %p37, %s38, %s39
      %p43 = pneg %p37
      %p44 = scmp.eq.s32.totalorder %s16, 1
      %p45 = por %p43, %p44
      %p46 = scmp.ne.s32.totalorder %s38, %s41
      %p47 = scmp.eq.s32.totalorder %s16, 0
      %p48 = por %p46, %p47
      %p49 = scmp.ne.s32.totalorder %s38, %s41
      %p50 = scmp.eq.s32.totalorder %s21, 1
      %p51 = por %p49, %p50
      %p52 = scmp.ne.s32.totalorder %s41, %s42
      %p53 = scmp.eq.s32.totalorder %s21, 0
      %p54 = por %p52, %p53
      %p55 = scmp.ne.s32.totalorder %s41, %s42
      %p56 = scmp.eq.s32.totalorder %s22, 1
      %p57 = por %p55, %p56
      %p59 = scmp.ne.s32.totalorder %s42, %s58
      %p60 = scmp.eq.s32.totalorder %s22, 0
      %p61 = por %p59, %p60
      %s62 = ssub.s32 %s23, %s35
      %p63 = scmp.eq.s32.totalorder %s62, 0
      %s65 = sadd.s32 %s64, 1
      %s66 = scalar_select %p63, %s64, %s65
      %p69 = pneg %p63
      %p70 = scmp.eq.s32.totalorder %s16, 1
      %p71 = por %p69, %p70
      %p72 = scmp.ne.s32.totalorder %s64, %s67
      %p73 = scmp.eq.s32.totalorder %s16, 0
      %p74 = por %p72, %p73
      %p75 = scmp.ne.s32.totalorder %s64, %s67
      %p76 = scmp.eq.s32.totalorder %s21, 1
      %p77 = por %p75, %p76
      %p78 = scmp.ne.s32.totalorder %s67, %s68
      %p79 = scmp.eq.s32.totalorder %s21, 0
      %p80 = por %p78, %p79
      %p81 = scmp.ne.s32.totalorder %s67, %s68
      %p82 = scmp.eq.s32.totalorder %s22, 1
      %p83 = por %p81, %p82
      %p85 = scmp.ne.s32.totalorder %s68, %s84
      %p86 = scmp.eq.s32.totalorder %s22, 0
      %p87 = por %p85, %p86
      %s88 = ssub.s32 %s23, %s35
      %s89 = ssub.s32 %s24, %s31
      %s90 = sor.u32 %s88, %s89
      %p91 = scmp.eq.s32.totalorder %s90, 0
      %s93 = sadd.s32 %s92, 1
      %s94 = scalar_select %p91, %s92, %s93
      %p97 = pneg %p91
      %p98 = scmp.eq.s32.totalorder %s16, 1
      %p99 = por %p97, %p98
      %p100 = scmp.ne.s32.totalorder %s92, %s95
      %p101 = scmp.eq.s32.totalorder %s16, 0
      %p102 = por %p100, %p101
      %p103 = scmp.ne.s32.totalorder %s92, %s95
      %p104 = scmp.eq.s32.totalorder %s21, 1
      %p105 = por %p103, %p104
      %p106 = scmp.ne.s32.totalorder %s95, %s96
      %p107 = scmp.eq.s32.totalorder %s21, 0
      %p108 = por %p106, %p107
      %p109 = scmp.ne.s32.totalorder %s95, %s96
      %p110 = scmp.eq.s32.totalorder %s22, 1
      %p111 = por %p109, %p110
      %p113 = scmp.ne.s32.totalorder %s96, %s112
      %p114 = scmp.eq.s32.totalorder %s22, 0
      %p115 = por %p113, %p114
      %s116 = ssub.s32 %s23, %s35
      %s117 = ssub.s32 %s24, %s31
      %s118 = sor.u32 %s116, %s117
      %p119 = scmp.eq.s32.totalorder %s118, 0
      %s121 = sadd.s32 %s120, 1
      %s122 = scalar_select %p119, %s120, %s121
      %p125 = pneg %p119
      %p126 = scmp.eq.s32.totalorder %s16, 1
      %p127 = por %p125, %p126
      %p128 = scmp.ne.s32.totalorder %s120, %s123
      %p129 = scmp.eq.s32.totalorder %s16, 0
      %p130 = por %p128, %p129
      %p131 = scmp.ne.s32.totalorder %s120, %s123
      %p132 = scmp.eq.s32.totalorder %s21, 1
      %p133 = por %p131, %p132
      %p134 = scmp.ne.s32.totalorder %s123, %s124
      %p135 = scmp.eq.s32.totalorder %s21, 0
      %p136 = por %p134, %p135
      %p137 = scmp.ne.s32.totalorder %s123, %s124
      %p138 = scmp.eq.s32.totalorder %s22, 1
      %p139 = por %p137, %p138
      %p141 = scmp.ne.s32.totalorder %s124, %s140
      %p142 = scmp.eq.s32.totalorder %s22, 0
      %p143 = por %p141, %p142
      %s144 = ssub.s32 %s23, %s35
      %s145 = ssub.s32 %s24, %s31
      %s146 = sor.u32 %s144, %s145
      %p147 = scmp.eq.s32.totalorder %s146, 0
      %s149 = sadd.s32 %s148, 1
      %s150 = scalar_select %p147, %s148, %s149
      %p153 = pneg %p147
      %p154 = scmp.eq.s32.totalorder %s16, 1
      %p155 = por %p153, %p154
      %p156 = scmp.ne.s32.totalorder %s148, %s151
      %p157 = scmp.eq.s32.totalorder %s16, 0
      %p158 = por %p156, %p157
      %p159 = scmp.ne.s32.totalorder %s148, %s151
      %p160 = scmp.eq.s32.totalorder %s21, 1
      %p161 = por %p159, %p160
      %p162 = scmp.ne.s32.totalorder %s151, %s152
      %p163 = scmp.eq.s32.totalorder %s21, 0
      %p164 = por %p162, %p163
      %p165 = scmp.ne.s32.totalorder %s151, %s152
      %p166 = scmp.eq.s32.totalorder %s22, 1
      %p167 = por %p165, %p166
      %p169 = scmp.ne.s32.totalorder %s152, %s168
      %p170 = scmp.eq.s32.totalorder %s22, 0
      %p171 = por %p169, %p170
      %p172 = scmp.le.s32.totalorder 1, %s16
      %p173 = scmp.lt.s32.totalorder %s16, 3
      %p174 = pnand %p172, %p173
      %p175 = pneg %p174
      // Predicated region
      $region9: #{tpu_custom_call.1} parent=5 // pred_check
        _
      $region10: #{tpu_custom_call.1} parent=5 // pred_check_branch
        %177 = sbr.rel (%p174) target = $region12
      $region11: #{tpu_custom_call.1} parent=5 // pred_region
        %s178 = ssub.s32 %s16, 1
        // Predicated region
        $region13: #{tpu_custom_call.1} parent=11 // pred_check
          %p179 = pneg %p54
        $region14: #{tpu_custom_call.1} parent=11 // pred_check_branch
          %181 = sbr.rel (%p179) target = $region16
        $region15: #{tpu_custom_call.1} parent=11 // pred_region
          %p182 = scmp.lt.s32.totalorder %s25, 0
          %s183 = scalar_select %p182, %s25, 0
          %s184 = smul.addr %s183, 2
          %s185 = scalar_lea.vmem %s0, %s184
        $region16: #{tpu_custom_call.1} parent=11 // pred_fallthru
          _
        // Predicated region
        $region17: #{tpu_custom_call.1} parent=11 // pred_check
          %p186 = pneg %p80
        $region18: #{tpu_custom_call.1} parent=11 // pred_check_branch
          %188 = sbr.rel (%p186) target = $region20
        $region19: #{tpu_custom_call.1} parent=11 // pred_region
          %p189 = scmp.lt.s32.totalorder %s25, 0
          %s190 = scalar_select %p189, %s25, 0
          %s191 = smul.addr %s190, 2
          %s192 = scalar_lea.vmem %s1, %s191
        $region20: #{tpu_custom_call.1} parent=11 // pred_fallthru
          _
      $region12: #{tpu_custom_call.1} parent=5 // pred_fallthru
        _
      %p193 = scmp.lt.s32.totalorder %s16, 2
      // Predicated region
      $region21: #{tpu_custom_call.1} parent=5 // pred_check
        %p194 = pneg %p193
      $region22: #{tpu_custom_call.1} parent=5 // pred_check_branch
        %196 = sbr.rel (%p194) target = $region24
      $region23: #{tpu_custom_call.1} parent=5 // pred_region
        // Predicated region
        $region25: #{tpu_custom_call.1} parent=23 // pred_check
          %p197 = pneg %p102
        $region26: #{tpu_custom_call.1} parent=23 // pred_check_branch
          %199 = sbr.rel (%p197) target = $region28
        $region27: #{tpu_custom_call.1} parent=23 // pred_region
          %s200 = sand.u32 %s92, 1
          %s201 = scalar_lea.sflag [#allocation3], %s200
          %s202 = sand.u32 %s92, 1
          %s203 = smul.addr %s202, 8
          %s204 = scalar_lea.vmem [#allocation2], %s203
          %s205 = smul.u32 4, %s24
          %s207 = ssub.s32 128, 128
          %208 = vsyncadd %s201, %s207
          %s209 = smul.addr %s23, 8
          %s210 = sadd.s32 %s205, %s209
          %s211 = smul.addr %s210, 32
          %s212 = scalar_lea.hbm %s2, %s211
          %s214 = sshll.u32 %s204, 4
          %s215 = int_to_ptr.vmem [resolvable:$true] %s214
          %217 = dma.hbm_to_vmem [thread:$0]  %s212, 128, %s215, %s201
        $region28: #{tpu_custom_call.1} parent=23 // pred_fallthru
          _
        // Predicated region
        $region29: #{tpu_custom_call.1} parent=23 // pred_check
          %p218 = pneg %p130
        $region30: #{tpu_custom_call.1} parent=23 // pred_check_branch
          %220 = sbr.rel (%p218) target = $region32
        $region31: #{tpu_custom_call.1} parent=23 // pred_region
          %s221 = smul.u32 4, %s24
          %p222 = scmp.lt.s32.totalorder %s23, 0
          %s223 = scalar_select %p222, %s23, 0
          %p224 = scmp.lt.s32.totalorder %s221, 7
          %s225 = scalar_select %p224, %s221, 7
          %s226 = smul.addr %s223, 8
          %s227 = sadd.s32 %s225, %s226
          %s228 = smul.addr %s227, 2
          %s229 = scalar_lea.vmem %s3, %s228
          %s230 = smul.u32 4, %s24
        $region32: #{tpu_custom_call.1} parent=23 // pred_fallthru
          _
      $region24: #{tpu_custom_call.1} parent=5 // pred_fallthru
        _
      %p231 = scmp.le.s32.totalorder 1, %s16
      %p232 = scmp.lt.s32.totalorder %s16, 3
      %p233 = pnand %p231, %p232
      %p234 = pneg %p233
      // Predicated region
      $region33: #{tpu_custom_call.1} parent=5 // pred_check
        _
      $region34: #{tpu_custom_call.1} parent=5 // pred_check_branch
        %236 = sbr.rel (%p233) target = $region36
      $region35: #{tpu_custom_call.1} parent=5 // pred_region
        %s237 = ssub.s32 %s16, 1
        %s238 = sand.u32 %s95, 1
        %s239 = scalar_lea.sflag [#allocation3], %s238
        %s240 = sand.u32 %s95, 1
        %s241 = smul.addr %s240, 8
        %s242 = scalar_lea.vmem [#allocation2], %s241
        // Predicated region
        $region37: #{tpu_custom_call.1} parent=35 // pred_check
          %p243 = pneg %p108
        $region38: #{tpu_custom_call.1} parent=35 // pred_check_branch
          %245 = sbr.rel (%p243) target = $region40
        $region39: #{tpu_custom_call.1} parent=35 // pred_region
          %246 = dma.done %s239, 128
        $region40: #{tpu_custom_call.1} parent=35 // pred_fallthru
          _
        %p247 = scmp.lt.s32.totalorder %s25, 0
        %s248 = scalar_select %p247, %s25, 0
        %s249 = smul.addr %s248, 2
        %s250 = scalar_lea.vmem %s0, %s249
        %p251 = pneg %p54
        %p252 = pneg %p51
        %p253 = scmp.lt.s32.totalorder %s25, 0
        %s254 = scalar_select %p253, %s25, 0
        %s255 = smul.addr %s254, 2
        %s256 = scalar_lea.vmem %s1, %s255
        %p257 = pneg %p80
        %p258 = pneg %p77
        %s259 = sand.u32 %s95, 1
        %s260 = scalar_lea.sflag [#allocation3], %s259
        %s261 = sand.u32 %s95, 1
        %s262 = smul.addr %s261, 8
        %s263 = scalar_lea.vmem [#allocation2], %s262
        %p264 = pneg %p108
        %p265 = pneg %p105
        %s266 = smul.u32 4, %s26
        %p267 = scmp.lt.s32.totalorder %s25, 0
        %s268 = scalar_select %p267, %s25, 0
        %p269 = scmp.lt.s32.totalorder %s266, 7
        %s270 = scalar_select %p269, %s266, 7
        %s271 = smul.addr %s268, 8
        %s272 = sadd.s32 %s270, %s271
        %s273 = smul.addr %s272, 2
        %s274 = scalar_lea.vmem %s3, %s273
        %p275 = pneg %p136
        %p276 = pneg %p133
        %p277 = pneg %p164
        %p278 = pneg %p161
        %s279 = sand.u32 %s151, 1
        %s280 = scalar_lea.sflag [#allocation4], %s279
        %s281 = sand.u32 %s151, 1
        %s282 = smul.addr %s281, 8
        %s283 = scalar_lea.vmem [#allocation5], %s282
        %p284 = scmp.lt.s32.totalorder %s25, 0
        %s285 = scalar_select %p284, %s25, 0
        %s286 = smul.addr %s285, 2
        %s287 = scalar_lea.vmem %s0, %s286
        %p288 = scmp.lt.s32.totalorder %s25, 0
        %s289 = scalar_select %p288, %s25, 0
        %s290 = smul.addr %s289, 2
        %s291 = scalar_lea.vmem %s1, %s290
        %s292 = smul.u32 4, %s26
        %s293 = smul.u32 4, %s26
        %p294 = scmp.lt.s32.totalorder %s25, 0
        %s295 = scalar_select %p294, %s25, 0
        %p296 = scmp.lt.s32.totalorder %s293, 7
        %s297 = scalar_select %p296, %s293, 7
        %s298 = smul.addr %s295, 8
        %s299 = sadd.s32 %s297, %s298
        %s300 = smul.addr %s299, 2
        %s301 = scalar_lea.vmem %s3, %s300
        %s302 = smul.u32 4, %s26
        %s303 = smul.u32 4, %s26
        %v304 = vld [vmem:[%s287] sm:$0x3]
        %v305 = vld [vmem:[%s291] sm:$0x3]
        %v306 = vld [vmem:[%s242] sm:$0xff]
        %308 = vset.pattern.permute.xlu0 0
        %309 = vperm.xlu0 %308, %v304
        %v310 = vpop.permute.xlu0 %309
        %v313 = vcombine.high %v306, %v306
        %v315 = vunpack.c.l.s4 1983009808
        %v316 = vunpack.c.0.s8 %v315
        %v317 = vlaneseq
        %v318 = vshrl.u32 %v317, 7
        %v319 = vsub.s32 %v316, %v318
        %v320 = vrot.slane %v306, %v319
        %v322 = vunpack.c.l.s4 1983009808
        %v323 = vunpack.c.0.s8 %v322
        %v324 = vlaneseq
        %v325 = vshrl.u32 %v324, 7
        %v326 = vsub.s32 %v323, %v325
        %v327 = vrot.slane %v313, %v326
        %v328 = vcombine.high %v320, %v320
        %v329 = vcombine.high %v327, %v327
        %v334 = vmul.f32 %v310, %v320
        %v335 = vmul.f32 %v310, %v328
        %v336 = vmul.f32 %v310, %v327
        %v337 = vmul.f32 %v310, %v329
        %v338 = vld [vmem:[%s301] sm:$0xff]
        %340 = vset.pattern.permute.xlu0 0
        %341 = vperm.xlu0 %340, %v305
        %v342 = vpop.permute.xlu0 %341
        %v345 = vcombine.high %v338, %v338
        %v347 = vunpack.c.l.s4 1983009808
        %v348 = vunpack.c.0.s8 %v347
        %v349 = vlaneseq
        %v350 = vshrl.u32 %v349, 7
        %v351 = vsub.s32 %v348, %v350
        %v352 = vrot.slane %v338, %v351
        %v354 = vunpack.c.l.s4 1983009808
        %v355 = vunpack.c.0.s8 %v354
        %v356 = vlaneseq
        %v357 = vshrl.u32 %v356, 7
        %v358 = vsub.s32 %v355, %v357
        %v359 = vrot.slane %v345, %v358
        %v360 = vcombine.high %v352, %v352
        %v361 = vcombine.high %v359, %v359
        %v366 = vmul.f32 %v342, %v352
        %v367 = vmul.f32 %v342, %v360
        %v368 = vmul.f32 %v342, %v359
        %v369 = vmul.f32 %v342, %v361
        %v370 = vadd.f32 %v334, %v366
        %v371 = vadd.f32 %v335, %v367
        %v372 = vadd.f32 %v336, %v368
        %v373 = vadd.f32 %v337, %v369
        %v378 = vcombine.low %v370, %v371
        %v379 = vcombine.low %v372, %v373
        %v381 = vunpack.c.l.s4 1983009808
        %v382 = vunpack.c.0.s8 %v381
        %v383 = vlaneseq
        %v384 = vshrl.u32 %v383, 7
        %v385 = vsub.s32 %v382, %v384
        %v386 = vrot.slane %v378, %v385
        %v388 = vunpack.c.l.s4 1983009808
        %v389 = vunpack.c.0.s8 %v388
        %v390 = vlaneseq
        %v391 = vshrl.u32 %v390, 7
        %v392 = vsub.s32 %v389, %v391
        %v393 = vrot.slane %v379, %v392
        %v394 = vcombine.low %v386, %v393
        %396 = vst [vmem:[%s283] sm:$0xff] %v394
        %s397 = sand.u32 %s151, 1
        %s398 = scalar_lea.sflag [#allocation4], %s397
        %s399 = sand.u32 %s151, 1
        %s400 = smul.addr %s399, 8
        %s401 = scalar_lea.vmem [#allocation5], %s400
        // Predicated region
        $region41: #{tpu_custom_call.1} parent=35 // pred_check
          %p402 = pneg %p161
        $region42: #{tpu_custom_call.1} parent=35 // pred_check_branch
          %404 = sbr.rel (%p402) target = $region44
        $region43: #{tpu_custom_call.1} parent=35 // pred_region
          %s405 = smul.u32 4, %s26
          %s407 = ssub.s32 128, 128
          %408 = vsyncadd %s398, %s407
          %s409 = smul.addr %s25, 8
          %s410 = sadd.s32 %s405, %s409
          %s411 = smul.addr %s410, 32
          %s412 = scalar_lea.hbm %s4, %s411
          %s414 = sshll.u32 %s401, 4
          %s415 = int_to_ptr.vmem [resolvable:$true] %s414
          %417 = dma.vmem_to_hbm [thread:$0]  %s415, 128, %s412, %s398
        $region44: #{tpu_custom_call.1} parent=35 // pred_fallthru
          _
      $region36: #{tpu_custom_call.1} parent=5 // pred_fallthru
        _
      %p418 = scmp.le.s32.totalorder 2, %s16
      // Predicated region
      $region45: #{tpu_custom_call.1} parent=5 // pred_check
        %p419 = pneg %p418
      $region46: #{tpu_custom_call.1} parent=5 // pred_check_branch
        %421 = sbr.rel (%p419) target = $region48
      $region47: #{tpu_custom_call.1} parent=5 // pred_region
        %s422 = ssub.s32 %s16, 2
        // Predicated region
        $region49: #{tpu_custom_call.1} parent=47 // pred_check
          %p423 = pneg %p167
        $region50: #{tpu_custom_call.1} parent=47 // pred_check_branch
          %425 = sbr.rel (%p423) target = $region52
        $region51: #{tpu_custom_call.1} parent=47 // pred_region
          %s426 = sand.u32 %s152, 1
          %s427 = scalar_lea.sflag [#allocation4], %s426
          %s428 = sand.u32 %s152, 1
          %s429 = smul.addr %s428, 8
          %s430 = scalar_lea.vmem [#allocation5], %s429
          %431 = dma.done %s427, 128
        $region52: #{tpu_custom_call.1} parent=47 // pred_fallthru
          _
      $region48: #{tpu_custom_call.1} parent=5 // pred_fallthru
        _
    $region6: #{tpu_custom_call.1} parent=1 // loop_footer
      %s20 = sadd.s32 1, %s16
    $region7: #{tpu_custom_call.1} parent=1 // loop_footer_branch
      %15 = sbr.rel target = $region3
    $region8: #{tpu_custom_call.1} parent=1 // loop_exit
      _
    %432 = vsyncpa [#allocation3], 1
    %s433 = scalar_lea.sflag [#allocation3], 1
    %434 = vsyncpa %s433, 1
    %435 = vsyncpa [#allocation4], 1
    %s436 = scalar_lea.sflag [#allocation4], 1
    %437 = vsyncpa %s436, 1

</llo_original>
